<compile_context>
chip_gen: v6e
topology: v6e:2x2x1
jax: 0.10.0
libtpu: 0.0.40
codegen_flags: <defaults>
</compile_context>

<pallas_src>
import functools

import jax
import jax.numpy as jnp
from jax.experimental import pallas as pl
from jax.experimental.pallas import tpu as pltpu

EPS = 1e-5
HI = jax.lax.Precision.HIGHEST


# ----------------------------- fused Pallas kernel -----------------------------

def _gcn_fused_kernel(x_ref, w1_ref, bvec_ref, biga_ref, wtap_ref, o_ref,
                      *, joints):
    """Per-batch fused GCN block.

    x_ref    : (1, Cin, F*J)  f32   input, channels on sublanes, F*J on lanes
    w1_ref   : (P*Cout, Cin)  bf16  1x1 conv weights with BN scale folded in
    bvec_ref : (P*Cout, 4)    f32   col 0 = conv bias + BN shift,
                                    cols 1..3 (rows 0:Cout) = [a2, c2, c3+cr]
    biga_ref : (P, F*J, F*J)  bf16  kron(I_F, A[p]*edge_importance[p])
    wtap_ref : (3*Cout, Cout+Cin) bf16  per-tap [main | residual] (3,1) conv
                                    weights, trailing BN scales folded in
    o_ref    : (1, Cout, F*J) f32   output (lane-dense, 128 lanes)
    """
    f32, bf16 = jnp.float32, jnp.bfloat16
    x = x_ref[0]                                   # (Cin, FJ) f32
    fj = x.shape[-1]
    c_out = o_ref.shape[1]
    n_part = biga_ref.shape[0]
    J = joints

    bvec = bvec_ref[...]                           # (P*Cout, 4) f32
    b1 = bvec[:, 0:1]                              # (P*Cout, 1)
    a2 = bvec[0:c_out, 1:2]
    c2 = bvec[0:c_out, 2:3]
    btr = bvec[0:c_out, 3:4]                       # folded c3 + cr

    x_bf = x.astype(bf16)

    # --- conv_block: 1x1 conv (+ folded BN) + ReLU --------------------------------
    y = jnp.dot(w1_ref[...], x_bf, preferred_element_type=f32) + b1
    y = jnp.maximum(y, 0.0)                        # (P*Cout, FJ) f32
    y_bf = y.astype(bf16)

    # --- graph contraction: einsum('bpcfj,pjw->bcfw') == sum_p y_p @ kron(I_F, A_p)
    g = jnp.dot(y_bf[0:c_out], biga_ref[0], preferred_element_type=f32)
    for p in range(1, n_part):
        g = g + jnp.dot(y_bf[p * c_out:(p + 1) * c_out], biga_ref[p],
                        preferred_element_type=f32)        # (Cout, FJ) f32

    # --- temporal_block: BN -> ReLU ------------------------------------------------
    h = jnp.maximum(g * a2 + c2, 0.0)              # (Cout, FJ) f32

    # --- (3,1) temporal conv (main) + (3,1) residual conv, shifts commuted --------
    # Channel matmul first (weights act only on sublanes), frame shift after
    # (pure lane permutation with zero-fill) -- the two operations commute.
    hx = jnp.concatenate([h.astype(bf16), x_bf], axis=0)        # (Cout+Cin, FJ)
    t = jnp.dot(wtap_ref[...], hx, preferred_element_type=f32)  # (3*Cout, FJ)

    lane = jax.lax.broadcasted_iota(jnp.int32, (c_out, fj), 1)
    # tap0: output frame f takes frame f-1  -> roll toward higher lanes by J
    t_prev = pltpu.roll(t[0:c_out], shift=J, axis=1)
    t_prev = jnp.where(lane >= J, t_prev, 0.0)
    # tap2: output frame f takes frame f+1  -> roll toward lower lanes by J
    t_next = pltpu.roll(t[2 * c_out:3 * c_out], shift=fj - J, axis=1)
    t_next = jnp.where(lane < fj - J, t_next, 0.0)

    out = t_prev + t[c_out:2 * c_out] + t_next + btr
    o_ref[0] = out.astype(o_ref.dtype)


# ----------------------------- pallas_call wrapper -----------------------------

def gcn_block_forward(x, kparams):
    """x: (B, Cin, F, J) float32 NCHW -> (B, Cout, F, J) float32 NCHW."""
    B, Cin, F, J = x.shape
    P = kparams['biga'].shape[0]
    Cout = kparams['w1f'].shape[0] // P
    FJ = F * J

    # NCHW is already (B, C, F*J)-contiguous -> reshape only, no transpose.
    x3 = x.reshape(B, Cin, FJ)

    kernel = functools.partial(_gcn_fused_kernel, joints=J)
    out = pl.pallas_call(
        kernel,
        out_shape=jax.ShapeDtypeStruct((B, Cout, FJ), jnp.float32),
        grid_spec=pltpu.PrefetchScalarGridSpec(
            num_scalar_prefetch=0,
            grid=(B,),
            in_specs=[
                pl.BlockSpec((1, Cin, FJ), lambda b: (b, 0, 0)),
                pl.BlockSpec(kparams['w1f'].shape, lambda b: (0, 0)),
                pl.BlockSpec(kparams['bvec'].shape, lambda b: (0, 0)),
                pl.BlockSpec(kparams['biga'].shape, lambda b: (0, 0, 0)),
                pl.BlockSpec(kparams['wtap'].shape, lambda b: (0, 0)),
            ],
            out_specs=pl.BlockSpec((1, Cout, FJ), lambda b: (b, 0, 0)),
        ),
        compiler_params=pltpu.CompilerParams(
            dimension_semantics=("parallel",)),
    )(x3, kparams['w1f'], kparams['bvec'], kparams['biga'], kparams['wtap'])

    return out.reshape(B, Cout, F, J)


# ----------------------------- one-time parameter folding -----------------------------

def fold_params(p, frames):
    """Fold BN stats / graph matrices into kernel-ready tensors (done once).

    NOTE: edge_importance and all BN running stats are baked in; if they are
    trained/updated, this folding must be re-run each step.
    """
    Cin, PC = p['w1'].shape
    P, J, _ = p['A'].shape
    Cout = p['wt'].shape[-1]
    bf16 = jnp.bfloat16

    # conv_block: fold BN scale into the 1x1 weights; bias = folded shift.
    w1f = (p['w1'] * p['scale1'][None, :]).T.astype(bf16)      # (P*Cout, Cin)

    # graph: BigA[p] = kron(I_F, A[p] * edge_importance[p]) -> lane-dense matmul.
    # (0/1-normalized chain adjacency -> exactly representable in bf16 here.)
    aew = p['A'] * p['edge_importance']                        # (P, J, J)
    eyef = jnp.eye(frames, dtype=jnp.float32)
    biga = jnp.einsum('fg,pjw->pfjgw', eyef, aew).reshape(P, frames * J, frames * J)
    biga = biga.astype(bf16)

    # temporal main + residual, commuted-shift form: per-tap stacked weights
    # rows [k*Cout:(k+1)*Cout] = [ wt_s[k].T | wr_s[k].T ]  -> (3*Cout, Cout+Cin)
    wt_s = p['wt'] * p['a3'][None, None, :]                    # (3, Cout, Cout)
    if 'wr' in p:                                              # conv residual branch
        wr_s = p['wr'] * p['ar'][None, None, :]                # (3, Cin, Cout)
        cr = p['cr']
    else:                                                      # identity residual
        # Only reached when Cin == Cout (module gates the residual on that).
        wr_s = jnp.stack([jnp.zeros((Cin, Cout), jnp.float32),
                          jnp.eye(Cout, dtype=jnp.float32),
                          jnp.zeros((Cin, Cout), jnp.float32)], axis=0)
        cr = jnp.zeros((Cout,), jnp.float32)
    wtap = jnp.concatenate(
        [jnp.concatenate([wt_s[k].T, wr_s[k].T], axis=1) for k in range(3)],
        axis=0).astype(bf16)                                   # (3*Cout, Cout+Cin)

    # Pack conv bias / BN vectors into ONE small f32 side input.
    btr = p['c3'] + cr
    bvec = jnp.zeros((PC, 4), jnp.float32)
    bvec = bvec.at[:, 0].set(p['shift1'])
    bvec = bvec.at[:Cout, 1].set(p['a2'])
    bvec = bvec.at[:Cout, 2].set(p['c2'])
    bvec = bvec.at[:Cout, 3].set(btr)

    return dict(w1f=w1f, bvec=bvec, biga=biga, wtap=wtap)


# ----------------------------- model setup (plain JAX, one-time) -----------------------------

def build_spatial_adjacency(num_joints, partition):
    # TODO(synk): the original `Graph` class (ST-GCN skeleton, strategy='spatial',
    # max_hop=1, dilation=1) is not provided; build a deterministic 3-partition
    # spatial adjacency for a chain skeleton (self / inward / outward, in-degree
    # normalized) with the same (partition, J, J) shape the forward requires.
    assert partition == 3
    I = jnp.eye(num_joints, dtype=jnp.float32)
    idx = jnp.arange(num_joints - 1)
    inward = jnp.zeros((num_joints, num_joints), dtype=jnp.float32).at[idx, idx + 1].set(1.0)
    outward = inward.T

    def norm(a):
        deg = a.sum(axis=0)
        dinv = jnp.where(deg > 0, 1.0 / deg, 0.0)
        return a * dinv[None, :]

    return jnp.stack([norm(I), norm(inward), norm(outward)], axis=0)


def init_params(key, in_channels, out_channels, partition, num_joints):
    ks = jax.random.split(key, 13)
    PC = partition * out_channels

    def bn(k, n):
        kg, kb, km, kv = jax.random.split(k, 4)
        gamma = jax.random.uniform(kg, (n,), minval=0.5, maxval=1.5)
        beta = 0.1 * jax.random.normal(kb, (n,))
        mean = 0.1 * jax.random.normal(km, (n,))
        var = jax.random.uniform(kv, (n,), minval=0.5, maxval=1.5)
        return gamma, beta, mean, var

    # conv_block: Conv2d(in, out*P, 1x1) + BN + ReLU -> BN folded to scale/shift.
    w1 = 0.2 * jax.random.normal(ks[0], (in_channels, PC), dtype=jnp.float32)
    b1 = 0.05 * jax.random.normal(ks[1], (PC,), dtype=jnp.float32)
    g1, be1, m1, v1 = bn(ks[2], PC)
    scale1 = g1 / jnp.sqrt(v1 + EPS)
    shift1 = (b1 - m1) * scale1 + be1

    # temporal_block: BN2 -> ReLU -> Conv2d(out,out,(3,1)) -> BN3 (Dropout p=0 = id).
    g2, be2, m2, v2 = bn(ks[3], out_channels)
    a2 = g2 / jnp.sqrt(v2 + EPS)
    c2 = be2 - m2 * a2
    wt = 0.2 * jax.random.normal(ks[4], (3, out_channels, out_channels), dtype=jnp.float32)
    bt = 0.05 * jax.random.normal(ks[5], (out_channels,), dtype=jnp.float32)
    g3, be3, m3, v3 = bn(ks[6], out_channels)
    a3 = g3 / jnp.sqrt(v3 + EPS)
    c3 = a3 * (bt - m3) + be3

    A = build_spatial_adjacency(num_joints, partition)
    edge_importance = jnp.ones_like(A)   # nn.Parameter(torch.ones(A.size()))

    params = dict(w1=w1, scale1=scale1, shift1=shift1,
                  a2=a2, c2=c2, wt=wt, a3=a3, c3=c3,
                  A=A, edge_importance=edge_importance)

    if out_channels != in_channels:
        # residual branch: Conv2d(in,out,(3,1)) + BN
        wr = 0.2 * jax.random.normal(ks[7], (3, in_channels, out_channels), dtype=jnp.float32)
        br = 0.05 * jax.random.normal(ks[8], (out_channels,), dtype=jnp.float32)
        gr, ber, mr, vr = bn(ks[9], out_channels)
        ar = gr / jnp.sqrt(vr + EPS)
        cr = ar * (br - mr) + ber
        params.update(wr=wr, ar=ar, cr=cr)

    return params


# ----------------------------- pure-JAX reference -----------------------------

def reference_forward(x, p):
    B, Cin, F, J = x.shape
    P = p['A'].shape[0]
    Cout = p['wt'].shape[-1]

    y = jnp.einsum('bcfj,co->bofj', x, p['w1'], precision=HI)
    y = y * p['scale1'][None, :, None, None] + p['shift1'][None, :, None, None]
    y = jnp.maximum(y, 0.0)
    y = y.reshape(B, P, Cout, F, J)
    ew = p['A'] * p['edge_importance']
    g = jnp.einsum('bpcfj,pjw->bcfw', y, ew, precision=HI)

    def conv3_nchw(v, w3):  # v: (B, Ci, F, W); w3: (3, Ci, Co)
        vp = jnp.pad(v, ((0, 0), (0, 0), (1, 1), (0, 0)))
        return sum(jnp.einsum('bcfw,co->bofw', vp[:, :, k:k + F, :], w3[k], precision=HI)
                   for k in range(3))

    h = jnp.maximum(g * p['a2'][None, :, None, None] + p['c2'][None, :, None, None], 0.0)
    main = conv3_nchw(h, p['wt']) * p['a3'][None, :, None, None] + p['c3'][None, :, None, None]
    if 'wr' in p:
        res = conv3_nchw(x, p['wr']) * p['ar'][None, :, None, None] + p['cr'][None, :, None, None]
    else:
        res = x
    return main + res


# ----------------------------- main -----------------------------

if __name__ == "__main__":
    # F*J = 128 -> full lane width for the internal layout.
    B, Cin, Cout, F, J, P = 2, 16, 32, 8, 16, 3
    key = jax.random.PRNGKey(0)
    kx, kp = jax.random.split(key)
    x = jax.random.normal(kx, (B, Cin, F, J), dtype=jnp.float32)

    params = init_params(kp, Cin, Cout, P, J)          # module-style parameters
    kparams = fold_params(params, F)                   # one-time kernel folding

    fwd = jax.jit(gcn_block_forward)
    out = jax.block_until_ready(fwd(x, kparams))
    assert out.shape == (B, Cout, F, J), out.shape

    ref = reference_forward(x, params)
    err = float(jnp.max(jnp.abs(out - ref)))
    scale = float(jnp.max(jnp.abs(ref))) + 1e-6
    # bf16 MXU operands with f32 accumulation over 3 chained matmuls give
    # ~1e-3..1e-2 worst-case relative error; layout/ordering bugs would be O(1).
    assert err / scale < 2e-2, f"mismatch: max abs err {err}, ref scale {scale}"

    print("KERNEL_OK")
</pallas_src>

<mosaic_0001>
module attributes {stable_mosaic.version = 11 : i64} {
  func.func @_gcn_fused_kernel(%arg0: i32, %arg1: memref<1x16x128xf32, #tpu.memory_space<vmem>>, %arg2: memref<96x16xbf16, #tpu.memory_space<vmem>>, %arg3: memref<96x4xf32, #tpu.memory_space<vmem>>, %arg4: memref<3x128x128xbf16, #tpu.memory_space<vmem>>, %arg5: memref<96x48xbf16, #tpu.memory_space<vmem>>, %arg6: memref<1x32x128xf32, #tpu.memory_space<vmem>>) attributes {dimension_semantics = [#tpu.dimension_semantics<parallel>], iteration_bounds = array<i64: 2>, scalar_prefetch = 0 : i64, scratch_operands = 0 : i64, tpu.core_type = #tpu.core_type<tc>, window_params = [{transform_indices = @transform_0, window_bounds = array<i64: 1, 16, 128>}, {pipeline_mode = #tpu.pipeline_mode<synchronous>, transform_indices = @transform_1, window_bounds = array<i64: 96, 16>}, {pipeline_mode = #tpu.pipeline_mode<synchronous>, transform_indices = @transform_2, window_bounds = array<i64: 96, 4>}, {pipeline_mode = #tpu.pipeline_mode<synchronous>, transform_indices = @transform_3, window_bounds = array<i64: 3, 128, 128>}, {pipeline_mode = #tpu.pipeline_mode<synchronous>, transform_indices = @transform_4, window_bounds = array<i64: 96, 48>}, {transform_indices = @transform_5, window_bounds = array<i64: 1, 32, 128>}]} {
    %c0 = arith.constant 0 : index
    %c0_0 = arith.constant 0 : index
    %c0_1 = arith.constant 0 : index
    %0 = vector.load %arg1[%c0, %c0_0, %c0_1] : memref<1x16x128xf32, #tpu.memory_space<vmem>>, vector<1x16x128xf32>
    %1 = vector.shape_cast %0 : vector<1x16x128xf32> to vector<16x128xf32>
    %c0_2 = arith.constant 0 : index
    %c0_3 = arith.constant 0 : index
    %2 = vector.load %arg3[%c0_2, %c0_3] : memref<96x4xf32, #tpu.memory_space<vmem>>, vector<96x4xf32>
    %3 = vector.extract_strided_slice %2 {offsets = [0, 0], sizes = [96, 1], strides = [1, 1]} : vector<96x4xf32> to vector<96x1xf32>
    %4 = vector.extract_strided_slice %2 {offsets = [0, 1], sizes = [32, 1], strides = [1, 1]} : vector<96x4xf32> to vector<32x1xf32>
    %5 = vector.extract_strided_slice %2 {offsets = [0, 2], sizes = [32, 1], strides = [1, 1]} : vector<96x4xf32> to vector<32x1xf32>
    %6 = vector.extract_strided_slice %2 {offsets = [0, 3], sizes = [32, 1], strides = [1, 1]} : vector<96x4xf32> to vector<32x1xf32>
    %7 = arith.truncf %1 : vector<16x128xf32> to vector<16x128xbf16>
    %c0_4 = arith.constant 0 : index
    %c0_5 = arith.constant 0 : index
    %8 = vector.load %arg2[%c0_4, %c0_5] : memref<96x16xbf16, #tpu.memory_space<vmem>>, vector<96x16xbf16>
    %cst = arith.constant dense<0.000000e+00> : vector<96x128xf32>
    %9 = tpu.matmul %8, %7, %cst {dimension_numbers = #tpu.dot_dimension_numbers<[1], [0], [0], [1], [0, 0, 1, 1], [], []>} : vector<96x16xbf16>, vector<16x128xbf16>, vector<96x128xf32> -> vector<96x128xf32>
    %10 = vector.broadcast %3 : vector<96x1xf32> to vector<96x128xf32>
    %11 = arith.addf %9, %10 : vector<96x128xf32>
    %cst_6 = arith.constant 0.000000e+00 : f32
    %12 = vector.broadcast %cst_6 : f32 to vector<96x128xf32>
    %13 = arith.maximumf %11, %12 : vector<96x128xf32>
    %14 = arith.truncf %13 : vector<96x128xf32> to vector<96x128xbf16>
    %15 = vector.extract_strided_slice %14 {offsets = [0, 0], sizes = [32, 128], strides = [1, 1]} : vector<96x128xbf16> to vector<32x128xbf16>
    %c0_7 = arith.constant 0 : index
    %c0_8 = arith.constant 0 : index
    %c0_9 = arith.constant 0 : index
    %16 = vector.load %arg4[%c0_7, %c0_8, %c0_9] : memref<3x128x128xbf16, #tpu.memory_space<vmem>>, vector<1x128x128xbf16>
    %17 = vector.shape_cast %16 : vector<1x128x128xbf16> to vector<128x128xbf16>
    %cst_10 = arith.constant dense<0.000000e+00> : vector<32x128xf32>
    %18 = tpu.matmul %15, %17, %cst_10 {dimension_numbers = #tpu.dot_dimension_numbers<[1], [0], [0], [1], [0, 0, 1, 1], [], []>} : vector<32x128xbf16>, vector<128x128xbf16>, vector<32x128xf32> -> vector<32x128xf32>
    %19 = vector.extract_strided_slice %14 {offsets = [32, 0], sizes = [32, 128], strides = [1, 1]} : vector<96x128xbf16> to vector<32x128xbf16>
    %c1 = arith.constant 1 : index
    %c0_11 = arith.constant 0 : index
    %c0_12 = arith.constant 0 : index
    %20 = vector.load %arg4[%c1, %c0_11, %c0_12] : memref<3x128x128xbf16, #tpu.memory_space<vmem>>, vector<1x128x128xbf16>
    %21 = vector.shape_cast %20 : vector<1x128x128xbf16> to vector<128x128xbf16>
    %cst_13 = arith.constant dense<0.000000e+00> : vector<32x128xf32>
    %22 = tpu.matmul %19, %21, %cst_13 {dimension_numbers = #tpu.dot_dimension_numbers<[1], [0], [0], [1], [0, 0, 1, 1], [], []>} : vector<32x128xbf16>, vector<128x128xbf16>, vector<32x128xf32> -> vector<32x128xf32>
    %23 = arith.addf %18, %22 : vector<32x128xf32>
    %24 = vector.extract_strided_slice %14 {offsets = [64, 0], sizes = [32, 128], strides = [1, 1]} : vector<96x128xbf16> to vector<32x128xbf16>
    %c2 = arith.constant 2 : index
    %c0_14 = arith.constant 0 : index
    %c0_15 = arith.constant 0 : index
    %25 = vector.load %arg4[%c2, %c0_14, %c0_15] : memref<3x128x128xbf16, #tpu.memory_space<vmem>>, vector<1x128x128xbf16>
    %26 = vector.shape_cast %25 : vector<1x128x128xbf16> to vector<128x128xbf16>
    %cst_16 = arith.constant dense<0.000000e+00> : vector<32x128xf32>
    %27 = tpu.matmul %24, %26, %cst_16 {dimension_numbers = #tpu.dot_dimension_numbers<[1], [0], [0], [1], [0, 0, 1, 1], [], []>} : vector<32x128xbf16>, vector<128x128xbf16>, vector<32x128xf32> -> vector<32x128xf32>
    %28 = arith.addf %23, %27 : vector<32x128xf32>
    %29 = vector.broadcast %4 : vector<32x1xf32> to vector<32x128xf32>
    %30 = arith.mulf %28, %29 : vector<32x128xf32>
    %31 = vector.broadcast %5 : vector<32x1xf32> to vector<32x128xf32>
    %32 = arith.addf %30, %31 : vector<32x128xf32>
    %cst_17 = arith.constant 0.000000e+00 : f32
    %33 = vector.broadcast %cst_17 : f32 to vector<32x128xf32>
    %34 = arith.maximumf %32, %33 : vector<32x128xf32>
    %35 = arith.truncf %34 : vector<32x128xf32> to vector<32x128xbf16>
    %36 = tpu.concatenate %35, %7 in 0 : vector<32x128xbf16>, vector<16x128xbf16> -> vector<48x128xbf16>
    %c0_18 = arith.constant 0 : index
    %c0_19 = arith.constant 0 : index
    %37 = vector.load %arg5[%c0_18, %c0_19] : memref<96x48xbf16, #tpu.memory_space<vmem>>, vector<96x48xbf16>
    %cst_20 = arith.constant dense<0.000000e+00> : vector<96x128xf32>
    %38 = tpu.matmul %37, %36, %cst_20 {dimension_numbers = #tpu.dot_dimension_numbers<[1], [0], [0], [1], [0, 0, 1, 1], [], []>} : vector<96x48xbf16>, vector<48x128xbf16>, vector<96x128xf32> -> vector<96x128xf32>
    %39 = tpu.iota {dimensions = array<i32: 1>} : vector<32x128xi32>
    %40 = vector.extract_strided_slice %38 {offsets = [0, 0], sizes = [32, 128], strides = [1, 1]} : vector<96x128xf32> to vector<32x128xf32>
    %c16_i32 = arith.constant 16 : i32
    %41 = tpu.dynamic_rotate %40 by %c16_i32 dim 1 : vector<32x128xf32>, i32 -> vector<32x128xf32>
    %c16_i32_21 = arith.constant 16 : i32
    %42 = vector.broadcast %c16_i32_21 : i32 to vector<32x128xi32>
    %43 = arith.cmpi sge, %39, %42 : vector<32x128xi32>
    %cst_22 = arith.constant 0.000000e+00 : f32
    %44 = vector.broadcast %cst_22 : f32 to vector<32x128xf32>
    %45 = arith.select %43, %41, %44 : vector<32x128xi1>, vector<32x128xf32>
    %46 = vector.extract_strided_slice %38 {offsets = [64, 0], sizes = [32, 128], strides = [1, 1]} : vector<96x128xf32> to vector<32x128xf32>
    %c112_i32 = arith.constant 112 : i32
    %47 = tpu.dynamic_rotate %46 by %c112_i32 dim 1 : vector<32x128xf32>, i32 -> vector<32x128xf32>
    %c112_i32_23 = arith.constant 112 : i32
    %48 = vector.broadcast %c112_i32_23 : i32 to vector<32x128xi32>
    %49 = arith.cmpi slt, %39, %48 : vector<32x128xi32>
    %cst_24 = arith.constant 0.000000e+00 : f32
    %50 = vector.broadcast %cst_24 : f32 to vector<32x128xf32>
    %51 = arith.select %49, %47, %50 : vector<32x128xi1>, vector<32x128xf32>
    %52 = vector.extract_strided_slice %38 {offsets = [32, 0], sizes = [32, 128], strides = [1, 1]} : vector<96x128xf32> to vector<32x128xf32>
    %53 = arith.addf %45, %52 : vector<32x128xf32>
    %54 = arith.addf %53, %51 : vector<32x128xf32>
    %55 = vector.broadcast %6 : vector<32x1xf32> to vector<32x128xf32>
    %56 = arith.addf %54, %55 : vector<32x128xf32>
    %c0_25 = arith.constant 0 : index
    %c0_26 = arith.constant 0 : index
    %c0_27 = arith.constant 0 : index
    %57 = vector.load %arg6[%c0_25, %c0_26, %c0_27] : memref<1x32x128xf32, #tpu.memory_space<vmem>>, vector<1x32x128xf32>
    %58 = vector.shape_cast %57 : vector<1x32x128xf32> to vector<32x128xf32>
    %59 = vector.shape_cast %56 : vector<32x128xf32> to vector<1x32x128xf32>
    tpu.vector_store %arg6[%c0_25, %c0_26, %c0_27], %59 {strides = array<i32>} : memref<1x32x128xf32, #tpu.memory_space<vmem>>, vector<1x32x128xf32>,
    return
  }
  func.func @transform_0(%arg0: i32) -> (i32, i32, i32) {
    %c0_i32 = arith.constant 0 : i32
    %c0_i32_0 = arith.constant 0 : i32
    %c0_i32_1 = arith.constant 0 : i32
    return %arg0, %c0_i32, %c0_i32_0 : i32, i32, i32
  }
  func.func @transform_1(%arg0: i32) -> (i32, i32) {
    %c0_i32 = arith.constant 0 : i32
    %c0_i32_0 = arith.constant 0 : i32
    %c0_i32_1 = arith.constant 0 : i32
    return %c0_i32, %c0_i32_0 : i32, i32
  }
  func.func @transform_2(%arg0: i32) -> (i32, i32) {
    %c0_i32 = arith.constant 0 : i32
    %c0_i32_0 = arith.constant 0 : i32
    %c0_i32_1 = arith.constant 0 : i32
    return %c0_i32, %c0_i32_0 : i32, i32
  }
  func.func @transform_3(%arg0: i32) -> (i32, i32, i32) {
    %c0_i32 = arith.constant 0 : i32
    %c0_i32_0 = arith.constant 0 : i32
    %c0_i32_1 = arith.constant 0 : i32
    %c0_i32_2 = arith.constant 0 : i32
    return %c0_i32, %c0_i32_0, %c0_i32_1 : i32, i32, i32
  }
  func.func @transform_4(%arg0: i32) -> (i32, i32) {
    %c0_i32 = arith.constant 0 : i32
    %c0_i32_0 = arith.constant 0 : i32
    %c0_i32_1 = arith.constant 0 : i32
    return %c0_i32, %c0_i32_0 : i32, i32
  }
  func.func @transform_5(%arg0: i32) -> (i32, i32, i32) {
    %c0_i32 = arith.constant 0 : i32
    %c0_i32_0 = arith.constant 0 : i32
    %c0_i32_1 = arith.constant 0 : i32
    return %arg0, %c0_i32, %c0_i32_0 : i32, i32, i32
  }
}

</mosaic_0001>

<llo_original>
// kernel: gcn_block_forward.1
$region0: #{gcn_block_forward.1}
  #allocation0 [shape = 'u32[]', space=smem, size = 0x4, offset = 0x4, fixed_abs, tag = 'smem constant byte address 0x4 - core index']
  #allocation1 [shape = 'u32[144,128]{1,0:T(1,128)}', space=vmem, size = 0x12000, scoped, tag = 'internal scratch']
  %s0 = inlined_call_operand.vmem [shape: f32[2,16,128], index: 0, kind: input, shape index: {}]
  %s1 = inlined_call_operand.vmem [shape: bf16[96,16], index: 1, kind: input, shape index: {}]
  %s2 = inlined_call_operand.vmem [shape: f32[96,4], index: 2, kind: input, shape index: {}]
  %s3 = inlined_call_operand.vmem [shape: bf16[3,128,128], index: 3, kind: input, shape index: {}]
  %s4 = inlined_call_operand.vmem [shape: bf16[96,48], index: 4, kind: input, shape index: {}]
  %s5 = inlined_call_operand.vmem [shape: f32[2,32,128], index: 5, kind: output, shape index: {}]
  %s6 = sld [smem:[#allocation0]]
  $region53: #{gcn_block_forward.1} parent=0
    _
  %s8 = ssub.s32 1, %s6
  %s9 = scalar_select 0, %s8, %s6
  loop: start=0, step=1, limit=4
  $region2: #{gcn_block_forward.1} parent=0 // loop_pre_header
    _
  $region3: #{gcn_block_forward.1} parent=0 // loop_header
    %s11 = sphi 0, %s15
    %p12 = scmp.ge.s32.totalorder %s11, 4
    %s21 = sphi 0, %s23
    %s24 = sphi 0, %s21
    %s25 = sphi 0, %s24
    %s41 = sphi 0, %s25
    %s45 = sphi 0, %s45
    %s47 = sphi 0, %s45
    %s48 = sphi 0, %s47
    %s62 = sphi 0, %s48
    %s66 = sphi 0, %s66
    %s68 = sphi 0, %s66
    %s69 = sphi 0, %s68
    %s83 = sphi 0, %s69
    %s87 = sphi 0, %s87
    %s89 = sphi 0, %s87
    %s90 = sphi 0, %s89
    %s104 = sphi 0, %s90
    %s108 = sphi 0, %s108
    %s110 = sphi 0, %s108
    %s111 = sphi 0, %s110
    %s125 = sphi 0, %s111
    %s131 = sphi 0, %s133
    %s134 = sphi 0, %s131
    %s135 = sphi 0, %s134
    %s151 = sphi 0, %s135
  $region4: #{gcn_block_forward.1} parent=0 // loop_header_branch
    %14 = sbr.rel (%p12) target = $region8
  $region5: #{gcn_block_forward.1} parent=0 // loop_body
    %s16 = ssub.s32 %s11, 1
    %s17 = ssub.s32 %s11, 2
    %s18 = sadd.s32 %s11, 1
    %s19 = ssub.s32 %s11, %s18
    %p20 = scmp.eq.s32.totalorder %s19, 0
    %s22 = sadd.s32 %s21, 1
    %s23 = scalar_select %p20, %s21, %s22
    %p26 = pneg %p20
    %p27 = scmp.eq.s32.totalorder %s11, 1
    %p28 = por %p26, %p27
    %p29 = scmp.ne.s32.totalorder %s21, %s24
    %p30 = scmp.eq.s32.totalorder %s11, 0
    %p31 = por %p29, %p30
    %p32 = scmp.ne.s32.totalorder %s21, %s24
    %p33 = scmp.eq.s32.totalorder %s16, 1
    %p34 = por %p32, %p33
    %p35 = scmp.ne.s32.totalorder %s24, %s25
    %p36 = scmp.eq.s32.totalorder %s16, 0
    %p37 = por %p35, %p36
    %p38 = scmp.ne.s32.totalorder %s24, %s25
    %p39 = scmp.eq.s32.totalorder %s17, 1
    %p40 = por %p38, %p39
    %p42 = scmp.ne.s32.totalorder %s25, %s41
    %p43 = scmp.eq.s32.totalorder %s17, 0
    %p44 = por %p42, %p43
    %s46 = sadd.s32 %s45, 1
    %p49 = scmp.eq.s32.totalorder %s11, 1
    %p50 = scmp.ne.s32.totalorder %s45, %s47
    %p51 = scmp.eq.s32.totalorder %s11, 0
    %p52 = por %p50, %p51
    %p53 = scmp.ne.s32.totalorder %s45, %s47
    %p54 = scmp.eq.s32.totalorder %s16, 1
    %p55 = por %p53, %p54
    %p56 = scmp.ne.s32.totalorder %s47, %s48
    %p57 = scmp.eq.s32.totalorder %s16, 0
    %p58 = por %p56, %p57
    %p59 = scmp.ne.s32.totalorder %s47, %s48
    %p60 = scmp.eq.s32.totalorder %s17, 1
    %p61 = por %p59, %p60
    %p63 = scmp.ne.s32.totalorder %s48, %s62
    %p64 = scmp.eq.s32.totalorder %s17, 0
    %p65 = por %p63, %p64
    %s67 = sadd.s32 %s66, 1
    %p70 = scmp.eq.s32.totalorder %s11, 1
    %p71 = scmp.ne.s32.totalorder %s66, %s68
    %p72 = scmp.eq.s32.totalorder %s11, 0
    %p73 = por %p71, %p72
    %p74 = scmp.ne.s32.totalorder %s66, %s68
    %p75 = scmp.eq.s32.totalorder %s16, 1
    %p76 = por %p74, %p75
    %p77 = scmp.ne.s32.totalorder %s68, %s69
    %p78 = scmp.eq.s32.totalorder %s16, 0
    %p79 = por %p77, %p78
    %p80 = scmp.ne.s32.totalorder %s68, %s69
    %p81 = scmp.eq.s32.totalorder %s17, 1
    %p82 = por %p80, %p81
    %p84 = scmp.ne.s32.totalorder %s69, %s83
    %p85 = scmp.eq.s32.totalorder %s17, 0
    %p86 = por %p84, %p85
    %s88 = sadd.s32 %s87, 1
    %p91 = scmp.eq.s32.totalorder %s11, 1
    %p92 = scmp.ne.s32.totalorder %s87, %s89
    %p93 = scmp.eq.s32.totalorder %s11, 0
    %p94 = por %p92, %p93
    %p95 = scmp.ne.s32.totalorder %s87, %s89
    %p96 = scmp.eq.s32.totalorder %s16, 1
    %p97 = por %p95, %p96
    %p98 = scmp.ne.s32.totalorder %s89, %s90
    %p99 = scmp.eq.s32.totalorder %s16, 0
    %p100 = por %p98, %p99
    %p101 = scmp.ne.s32.totalorder %s89, %s90
    %p102 = scmp.eq.s32.totalorder %s17, 1
    %p103 = por %p101, %p102
    %p105 = scmp.ne.s32.totalorder %s90, %s104
    %p106 = scmp.eq.s32.totalorder %s17, 0
    %p107 = por %p105, %p106
    %s109 = sadd.s32 %s108, 1
    %p112 = scmp.eq.s32.totalorder %s11, 1
    %p113 = scmp.ne.s32.totalorder %s108, %s110
    %p114 = scmp.eq.s32.totalorder %s11, 0
    %p115 = por %p113, %p114
    %p116 = scmp.ne.s32.totalorder %s108, %s110
    %p117 = scmp.eq.s32.totalorder %s16, 1
    %p118 = por %p116, %p117
    %p119 = scmp.ne.s32.totalorder %s110, %s111
    %p120 = scmp.eq.s32.totalorder %s16, 0
    %p121 = por %p119, %p120
    %p122 = scmp.ne.s32.totalorder %s110, %s111
    %p123 = scmp.eq.s32.totalorder %s17, 1
    %p124 = por %p122, %p123
    %p126 = scmp.ne.s32.totalorder %s111, %s125
    %p127 = scmp.eq.s32.totalorder %s17, 0
    %p128 = por %p126, %p127
    %s129 = ssub.s32 %s11, %s18
    %p130 = scmp.eq.s32.totalorder %s129, 0
    %s132 = sadd.s32 %s131, 1
    %s133 = scalar_select %p130, %s131, %s132
    %p136 = pneg %p130
    %p137 = scmp.eq.s32.totalorder %s11, 1
    %p138 = por %p136, %p137
    %p139 = scmp.ne.s32.totalorder %s131, %s134
    %p140 = scmp.eq.s32.totalorder %s11, 0
    %p141 = por %p139, %p140
    %p142 = scmp.ne.s32.totalorder %s131, %s134
    %p143 = scmp.eq.s32.totalorder %s16, 1
    %p144 = por %p142, %p143
    %p145 = scmp.ne.s32.totalorder %s134, %s135
    %p146 = scmp.eq.s32.totalorder %s16, 0
    %p147 = por %p145, %p146
    %p148 = scmp.ne.s32.totalorder %s134, %s135
    %p149 = scmp.eq.s32.totalorder %s17, 1
    %p150 = por %p148, %p149
    %p152 = scmp.ne.s32.totalorder %s135, %s151
    %p153 = scmp.eq.s32.totalorder %s17, 0
    %p154 = por %p152, %p153
    %p155 = scmp.le.s32.totalorder 1, %s11
    %p156 = scmp.lt.s32.totalorder %s11, 3
    %p157 = pnand %p155, %p156
    %p158 = pneg %p157
    // Predicated region
    $region9: #{gcn_block_forward.1} parent=5 // pred_check
      _
    $region10: #{gcn_block_forward.1} parent=5 // pred_check_branch
      %160 = sbr.rel (%p157) target = $region12
    $region11: #{gcn_block_forward.1} parent=5 // pred_region
      %s161 = ssub.s32 %s11, 1
      // Predicated region
      $region13: #{gcn_block_forward.1} parent=11 // pred_check
        %p162 = pneg %p58
      $region14: #{gcn_block_forward.1} parent=11 // pred_check_branch
        %164 = sbr.rel (%p162) target = $region16
      $region15: #{gcn_block_forward.1} parent=11 // pred_region
        _
      $region16: #{gcn_block_forward.1} parent=11 // pred_fallthru
        _
      // Predicated region
      $region17: #{gcn_block_forward.1} parent=11 // pred_check
        %p165 = pneg %p79
      $region18: #{gcn_block_forward.1} parent=11 // pred_check_branch
        %167 = sbr.rel (%p165) target = $region20
      $region19: #{gcn_block_forward.1} parent=11 // pred_region
        _
      $region20: #{gcn_block_forward.1} parent=11 // pred_fallthru
        _
      // Predicated region
      $region21: #{gcn_block_forward.1} parent=11 // pred_check
        %p168 = pneg %p100
      $region22: #{gcn_block_forward.1} parent=11 // pred_check_branch
        %170 = sbr.rel (%p168) target = $region24
      $region23: #{gcn_block_forward.1} parent=11 // pred_region
        _
      $region24: #{gcn_block_forward.1} parent=11 // pred_fallthru
        _
      // Predicated region
      $region25: #{gcn_block_forward.1} parent=11 // pred_check
        %p171 = pneg %p121
      $region26: #{gcn_block_forward.1} parent=11 // pred_check_branch
        %173 = sbr.rel (%p171) target = $region28
      $region27: #{gcn_block_forward.1} parent=11 // pred_region
        _
      $region28: #{gcn_block_forward.1} parent=11 // pred_fallthru
        _
    $region12: #{gcn_block_forward.1} parent=5 // pred_fallthru
      _
    %p174 = scmp.lt.s32.totalorder %s11, 2
    // Predicated region
    $region29: #{gcn_block_forward.1} parent=5 // pred_check
      %p175 = pneg %p174
    $region30: #{gcn_block_forward.1} parent=5 // pred_check_branch
      %177 = sbr.rel (%p175) target = $region32
    $region31: #{gcn_block_forward.1} parent=5 // pred_region
      // Predicated region
      $region33: #{gcn_block_forward.1} parent=31 // pred_check
        %p178 = pneg %p31
      $region34: #{gcn_block_forward.1} parent=31 // pred_check_branch
        %180 = sbr.rel (%p178) target = $region36
      $region35: #{gcn_block_forward.1} parent=31 // pred_region
        %p181 = scmp.lt.s32.totalorder %s11, 1
        %s182 = scalar_select %p181, %s11, 1
        %s183 = smul.addr %s182, 2
        %s184 = smul.addr %s183, 8
        %s185 = scalar_lea.vmem %s0, %s184
      $region36: #{gcn_block_forward.1} parent=31 // pred_fallthru
        _
    $region32: #{gcn_block_forward.1} parent=5 // pred_fallthru
      _
    %p186 = scmp.le.s32.totalorder 1, %s11
    %p187 = scmp.lt.s32.totalorder %s11, 3
    %p188 = pnand %p186, %p187
    %p189 = pneg %p188
    // Predicated region
    $region37: #{gcn_block_forward.1} parent=5 // pred_check
      _
    $region38: #{gcn_block_forward.1} parent=5 // pred_check_branch
      %191 = sbr.rel (%p188) target = $region40
    $region39: #{gcn_block_forward.1} parent=5 // pred_region
      %s192 = ssub.s32 %s11, 1
      %p193 = scmp.lt.s32.totalorder %s16, 1
      %s194 = scalar_select %p193, %s16, 1
      %s195 = smul.addr %s194, 2
      %s196 = smul.addr %s195, 8
      %s197 = scalar_lea.vmem %s0, %s196
      %p198 = pneg %p37
      %p199 = pneg %p34
      %p200 = pneg %p58
      %p201 = pneg %p55
      %p202 = pneg %p79
      %p203 = pneg %p76
      %p204 = pneg %p100
      %p205 = pneg %p97
      %p206 = pneg %p121
      %p207 = pneg %p118
      %p208 = pneg %p147
      %p209 = pneg %p144
      %p210 = scmp.lt.s32.totalorder %s16, 1
      %s211 = scalar_select %p210, %s16, 1
      %s212 = smul.addr %s211, 4
      %s213 = smul.addr %s212, 8
      %s214 = scalar_lea.vmem %s5, %s213
      %p215 = scmp.lt.s32.totalorder %s16, 1
      %s216 = scalar_select %p215, %s16, 1
      %s217 = smul.addr %s216, 2
      %s218 = smul.addr %s217, 8
      %s219 = scalar_lea.vmem %s0, %s218
      %p220 = scmp.lt.s32.totalorder %s16, 1
      %s221 = scalar_select %p220, %s16, 1
      %s222 = smul.addr %s221, 4
      %s223 = smul.addr %s222, 8
      %s224 = scalar_lea.vmem %s5, %s223
      %v226 = vld [vmem:[%s219] sm:$0xff]
      %v227 = vld [vmem:[%s219 + $0x8] sm:$0xff]
      %v228 = vld [vmem:[%s2] sm:$0xff]
      %v229 = vld [vmem:[%s2 + $0x8] sm:$0xff]
      %v230 = vld [vmem:[%s2 + $0x10] sm:$0xff]
      %v231 = vld [vmem:[%s2 + $0x18] sm:$0xff]
      %v232 = vld [vmem:[%s2 + $0x20] sm:$0xff]
      %v233 = vld [vmem:[%s2 + $0x28] sm:$0xff]
      %v234 = vld [vmem:[%s2 + $0x30] sm:$0xff]
      %v235 = vld [vmem:[%s2 + $0x38] sm:$0xff]
      %v236 = vld [vmem:[%s2 + $0x40] sm:$0xff]
      %v237 = vld [vmem:[%s2 + $0x48] sm:$0xff]
      %v238 = vld [vmem:[%s2 + $0x50] sm:$0xff]
      %v239 = vld [vmem:[%s2 + $0x58] sm:$0xff]
      %v240 = vpack.c.bf16 %v227, %v226
      %v241 = vld [vmem:[%s1] sm:$0xf]
      %v242 = vld [vmem:[%s1 + $0x4] sm:$0xf]
      %v243 = vld [vmem:[%s1 + $0x8] sm:$0xf]
      %v244 = vld [vmem:[%s1 + $0xc] sm:$0xf]
      %v245 = vld [vmem:[%s1 + $0x10] sm:$0xf]
      %v246 = vld [vmem:[%s1 + $0x14] sm:$0xf]
      %v247 = vld [vmem:[%s1 + $0x18] sm:$0xf]
      %v248 = vld [vmem:[%s1 + $0x1c] sm:$0xf]
      %v249 = vld [vmem:[%s1 + $0x20] sm:$0xf]
      %v250 = vld [vmem:[%s1 + $0x24] sm:$0xf]
      %v251 = vld [vmem:[%s1 + $0x28] sm:$0xf]
      %v252 = vld [vmem:[%s1 + $0x2c] sm:$0xf]
      %254 = vset.pattern.permute.xlu0 0
      %255 = vperm.xlu0 %254, %v228
      %v256 = vpop.permute.xlu0 %255
      %259 = vset.pattern.permute.xlu0 0
      %260 = vperm.xlu0 %259, %v229
      %v261 = vpop.permute.xlu0 %260
      %264 = vset.pattern.permute.xlu0 0
      %265 = vperm.xlu0 %264, %v230
      %v266 = vpop.permute.xlu0 %265
      %269 = vset.pattern.permute.xlu0 0
      %270 = vperm.xlu0 %269, %v231
      %v271 = vpop.permute.xlu0 %270
      %274 = vset.pattern.permute.xlu0 0
      %275 = vperm.xlu0 %274, %v232
      %v276 = vpop.permute.xlu0 %275
      %279 = vset.pattern.permute.xlu0 0
      %280 = vperm.xlu0 %279, %v233
      %v281 = vpop.permute.xlu0 %280
      %284 = vset.pattern.permute.xlu0 0
      %285 = vperm.xlu0 %284, %v234
      %v286 = vpop.permute.xlu0 %285
      %289 = vset.pattern.permute.xlu0 0
      %290 = vperm.xlu0 %289, %v235
      %v291 = vpop.permute.xlu0 %290
      %294 = vset.pattern.permute.xlu0 0
      %295 = vperm.xlu0 %294, %v236
      %v296 = vpop.permute.xlu0 %295
      %299 = vset.pattern.permute.xlu0 0
      %300 = vperm.xlu0 %299, %v237
      %v301 = vpop.permute.xlu0 %300
      %304 = vset.pattern.permute.xlu0 0
      %305 = vperm.xlu0 %304, %v238
      %v306 = vpop.permute.xlu0 %305
      %309 = vset.pattern.permute.xlu0 0
      %310 = vperm.xlu0 %309, %v239
      %v311 = vpop.permute.xlu0 %310
      %v325 = vunpack.c.l.b16 %v241
      %v326 = vunpack.c.l.b16 %v242
      %v327 = vunpack.c.l.b16 %v243
      %v328 = vunpack.c.l.b16 %v244
      %v329 = vunpack.c.l.b16 %v245
      %v330 = vunpack.c.l.b16 %v246
      %v331 = vunpack.c.l.b16 %v247
      %v332 = vunpack.c.l.b16 %v248
      %v333 = vunpack.c.l.b16 %v249
      %v334 = vunpack.c.l.b16 %v250
      %v335 = vunpack.c.l.b16 %v251
      %v336 = vunpack.c.l.b16 %v252
      %v337 = vpack.c.b16 %v326, %v325
      %v338 = vpack.c.b16 %v328, %v327
      %v339 = vpack.c.b16 %v330, %v329
      %v340 = vpack.c.b16 %v332, %v331
      %v341 = vpack.c.b16 %v334, %v333
      %v342 = vpack.c.b16 %v336, %v335
      %vm343 = vcmask 130048
      %v345 = vsel %vm343, %v337, 0
      %v348 = vsel %vm343, %v338, 0
      %v351 = vsel %vm343, %v339, 0
      %v354 = vsel %vm343, %v340, 0
      %v357 = vsel %vm343, %v341, 0
      %v360 = vsel %vm343, %v342, 0
      %362 = vmatprep.subr.bf16.mxu0 0
      %363 = vmatpush1.bf16.msra.mxu0 0
      %364 = vmatprep.subr.bf16.mxu0 0
      %365 = vmatpush1.bf16.msra.mxu0 0
      %366 = vmatprep.subr.bf16.mxu0 0
      %367 = vmatpush1.bf16.msra.mxu0 0
      %368 = vmatprep.subr.bf16.mxu0 0
      %369 = vmatpush1.bf16.msra.mxu0 0
      %370 = vmatprep.subr.bf16.mxu0 0
      %371 = vmatpush1.bf16.msra.mxu0 0
      %372 = vmatprep.subr.bf16.mxu0 0
      %373 = vmatpush1.bf16.msra.mxu0 0
      %374 = vmatprep.subr.bf16.mxu0 0
      %375 = vmatpush1.bf16.msra.mxu0 0
      %376 = vmatprep.subr.bf16.mxu0 0
      %377 = vmatpush1.bf16.msra.mxu0 %v240
      %378 = vmatprep.subr.bf16.mxu0 0
      %379 = vmatpush2.bf16.msra.mxu0 0
      %380 = vmatprep.subr.bf16.mxu0 0
      %381 = vmatpush2.bf16.msra.mxu0 0
      %382 = vmatprep.subr.bf16.mxu0 0
      %383 = vmatpush2.bf16.msra.mxu0 0
      %384 = vmatprep.subr.bf16.mxu0 0
      %385 = vmatpush2.bf16.msra.mxu0 0
      %386 = vmatprep.subr.bf16.mxu0 0
      %387 = vmatpush2.bf16.msra.mxu0 0
      %388 = vmatprep.subr.bf16.mxu0 0
      %389 = vmatpush2.bf16.msra.mxu0 0
      %390 = vmatprep.subr.bf16.mxu0 0
      %391 = vmatpush2.bf16.msra.mxu0 0
      %392 = vmatprep.subr.bf16.mxu0 0
      %393 = vmatpush2.bf16.msra.mxu0 0
      %394 = vmatprep.mubr.bf16.mxu0 0
      %395 = vmatmul.mubr.bf16.gmra.mxu0 %v345
      %v396 = vpop.f32.mrf.mxu0
      %v397 = vadd.f32 %v256, %v396
      %v398 = vpop.f32.mrf.mxu0
      %v399 = vpop.f32.mrf.mxu0
      %v400 = vadd.f32 %v261, %v399
      %v401 = vpop.f32.mrf.mxu0
      %402 = vmatprep.mubr.bf16.mxu0 0
      %403 = vmatmul.mubr.bf16.gmra.mxu0 %v348
      %v404 = vpop.f32.mrf.mxu0
      %v405 = vadd.f32 %v266, %v404
      %v406 = vpop.f32.mrf.mxu0
      %v407 = vpop.f32.mrf.mxu0
      %v408 = vadd.f32 %v271, %v407
      %v409 = vpop.f32.mrf.mxu0
      %410 = vmatprep.mubr.bf16.mxu0 0
      %411 = vmatmul.mubr.bf16.gmra.mxu0 %v351
      %v412 = vpop.f32.mrf.mxu0
      %v413 = vadd.f32 %v276, %v412
      %v414 = vpop.f32.mrf.mxu0
      %v415 = vpop.f32.mrf.mxu0
      %v416 = vadd.f32 %v281, %v415
      %v417 = vpop.f32.mrf.mxu0
      %418 = vmatprep.mubr.bf16.mxu0 0
      %419 = vmatmul.mubr.bf16.gmra.mxu0 %v354
      %v420 = vpop.f32.mrf.mxu0
      %v421 = vadd.f32 %v286, %v420
      %v422 = vpop.f32.mrf.mxu0
      %v423 = vpop.f32.mrf.mxu0
      %v424 = vadd.f32 %v291, %v423
      %v425 = vpop.f32.mrf.mxu0
      %426 = vmatprep.mubr.bf16.mxu0 0
      %427 = vmatmul.mubr.bf16.gmra.mxu0 %v357
      %v428 = vpop.f32.mrf.mxu0
      %v429 = vadd.f32 %v296, %v428
      %v430 = vpop.f32.mrf.mxu0
      %v431 = vpop.f32.mrf.mxu0
      %v432 = vadd.f32 %v301, %v431
      %v433 = vpop.f32.mrf.mxu0
      %434 = vmatprep.mubr.bf16.mxu0 0
      %435 = vmatmul.mubr.bf16.gmra.mxu0 %v360
      %v436 = vpop.f32.mrf.mxu0
      %v437 = vadd.f32 %v306, %v436
      %v438 = vpop.f32.mrf.mxu0
      %v439 = vpop.f32.mrf.mxu0
      %v440 = vadd.f32 %v311, %v439
      %v441 = vpop.f32.mrf.mxu0
      %442 = vdwg.mxu0
      %v443 = vmax.f32 %v397, 0.0
      %v444 = vmax.f32 %v400, 0.0
      %v445 = vmax.f32 %v405, 0.0
      %v446 = vmax.f32 %v408, 0.0
      %v447 = vmax.f32 %v413, 0.0
      %v448 = vmax.f32 %v416, 0.0
      %v449 = vmax.f32 %v421, 0.0
      %v450 = vmax.f32 %v424, 0.0
      %v451 = vmax.f32 %v429, 0.0
      %v452 = vmax.f32 %v432, 0.0
      %v453 = vmax.f32 %v437, 0.0
      %v454 = vmax.f32 %v440, 0.0
      %v455 = vpack.c.bf16 %v444, %v443
      %v456 = vpack.c.bf16 %v446, %v445
      %v457 = vpack.c.bf16 %v448, %v447
      %v458 = vpack.c.bf16 %v450, %v449
      %v459 = vpack.c.bf16 %v452, %v451
      %v460 = vpack.c.bf16 %v454, %v453
      %v461 = vld [vmem:[%s3] sm:$0xf]
      %v462 = vld [vmem:[%s3 + $0x4] sm:$0xf]
      %v463 = vld [vmem:[%s3 + $0x8] sm:$0xf]
      %v464 = vld [vmem:[%s3 + $0xc] sm:$0xf]
      %v465 = vld [vmem:[%s3 + $0x10] sm:$0xf]
      %v466 = vld [vmem:[%s3 + $0x14] sm:$0xf]
      %v467 = vld [vmem:[%s3 + $0x18] sm:$0xf]
      %v468 = vld [vmem:[%s3 + $0x1c] sm:$0xf]
      %v469 = vld [vmem:[%s3 + $0x20] sm:$0xf]
      %v470 = vld [vmem:[%s3 + $0x24] sm:$0xf]
      %v471 = vld [vmem:[%s3 + $0x28] sm:$0xf]
      %v472 = vld [vmem:[%s3 + $0x2c] sm:$0xf]
      %v473 = vld [vmem:[%s3 + $0x30] sm:$0xf]
      %v474 = vld [vmem:[%s3 + $0x34] sm:$0xf]
      %v475 = vld [vmem:[%s3 + $0x38] sm:$0xf]
      %v476 = vld [vmem:[%s3 + $0x3c] sm:$0xf]
      %s477 = scalar_lea.vmem %s3, 64
      %v478 = vld [vmem:[%s477] sm:$0xf]
      %v479 = vld [vmem:[%s477 + $0x4] sm:$0xf]
      %v480 = vld [vmem:[%s477 + $0x8] sm:$0xf]
      %v481 = vld [vmem:[%s477 + $0xc] sm:$0xf]
      %v482 = vld [vmem:[%s477 + $0x10] sm:$0xf]
      %v483 = vld [vmem:[%s477 + $0x14] sm:$0xf]
      %v484 = vld [vmem:[%s477 + $0x18] sm:$0xf]
      %v485 = vld [vmem:[%s477 + $0x1c] sm:$0xf]
      %v486 = vld [vmem:[%s477 + $0x20] sm:$0xf]
      %v487 = vld [vmem:[%s477 + $0x24] sm:$0xf]
      %v488 = vld [vmem:[%s477 + $0x28] sm:$0xf]
      %v489 = vld [vmem:[%s477 + $0x2c] sm:$0xf]
      %v490 = vld [vmem:[%s477 + $0x30] sm:$0xf]
      %v491 = vld [vmem:[%s477 + $0x34] sm:$0xf]
      %v492 = vld [vmem:[%s477 + $0x38] sm:$0xf]
      %v493 = vld [vmem:[%s477 + $0x3c] sm:$0xf]
      %v510 = vunpack.c.l.b16 %v478
      %v511 = vunpack.c.l.b16 %v479
      %v512 = vunpack.c.l.b16 %v480
      %v513 = vunpack.c.l.b16 %v481
      %v514 = vunpack.c.l.b16 %v482
      %v515 = vunpack.c.l.b16 %v483
      %v516 = vunpack.c.l.b16 %v484
      %v517 = vunpack.c.l.b16 %v485
      %v518 = vunpack.c.l.b16 %v486
      %v519 = vunpack.c.l.b16 %v487
      %v520 = vunpack.c.l.b16 %v488
      %v521 = vunpack.c.l.b16 %v489
      %v522 = vunpack.c.l.b16 %v490
      %v523 = vunpack.c.l.b16 %v491
      %v524 = vunpack.c.l.b16 %v492
      %v525 = vunpack.c.l.b16 %v493
      %v526 = vpack.c.b16 %v511, %v510
      %v527 = vpack.c.b16 %v513, %v512
      %v528 = vpack.c.b16 %v515, %v514
      %v529 = vpack.c.b16 %v517, %v516
      %v530 = vpack.c.b16 %v519, %v518
      %v531 = vpack.c.b16 %v521, %v520
      %v532 = vpack.c.b16 %v523, %v522
      %v533 = vpack.c.b16 %v525, %v524
      %542 = vmatprep.subr.bf16.mxu0 0
      %543 = vmatpush1.bf16.msra.mxu0 %v533
      %544 = vmatprep.subr.bf16.mxu0 0
      %545 = vmatpush1.bf16.msra.mxu0 %v532
      %546 = vmatprep.subr.bf16.mxu0 0
      %547 = vmatpush1.bf16.msra.mxu0 %v531
      %548 = vmatprep.subr.bf16.mxu0 0
      %549 = vmatpush1.bf16.msra.mxu0 %v530
      %550 = vmatprep.subr.bf16.mxu0 0
      %551 = vmatpush1.bf16.msra.mxu0 %v529
      %552 = vmatprep.subr.bf16.mxu0 0
      %553 = vmatpush1.bf16.msra.mxu0 %v528
      %554 = vmatprep.subr.bf16.mxu0 0
      %555 = vmatpush1.bf16.msra.mxu0 %v527
      %556 = vmatprep.subr.bf16.mxu0 0
      %557 = vmatpush1.bf16.msra.mxu0 %v526
      %558 = vmatprep.subr.bf16.mxu0 0
      %559 = vmatpush2.bf16.msra.mxu0 0
      %560 = vmatprep.subr.bf16.mxu0 0
      %561 = vmatpush2.bf16.msra.mxu0 0
      %562 = vmatprep.subr.bf16.mxu0 0
      %563 = vmatpush2.bf16.msra.mxu0 0
      %564 = vmatprep.subr.bf16.mxu0 0
      %565 = vmatpush2.bf16.msra.mxu0 0
      %566 = vmatprep.subr.bf16.mxu0 0
      %567 = vmatpush2.bf16.msra.mxu0 0
      %568 = vmatprep.subr.bf16.mxu0 0
      %569 = vmatpush2.bf16.msra.mxu0 0
      %570 = vmatprep.subr.bf16.mxu0 0
      %571 = vmatpush2.bf16.msra.mxu0 0
      %572 = vmatprep.subr.bf16.mxu0 0
      %573 = vmatpush2.bf16.msra.mxu0 0
      %574 = vmatprep.mubr.bf16.mxu0 0
      %575 = vmatmul.mubr.bf16.gmra.mxu0 %v457
      %v576 = vpop.f32.mrf.mxu0
      %v577 = vadd.f32 0.0, %v576
      %v578 = vpop.f32.mrf.mxu0
      %v579 = vpop.f32.mrf.mxu0
      %v580 = vadd.f32 0.0, %v579
      %v581 = vpop.f32.mrf.mxu0
      %582 = vmatprep.mubr.bf16.mxu0 0
      %583 = vmatmul.mubr.bf16.gmra.mxu0 %v458
      %v584 = vpop.f32.mrf.mxu0
      %v585 = vadd.f32 0.0, %v584
      %v586 = vpop.f32.mrf.mxu0
      %v587 = vpop.f32.mrf.mxu0
      %v588 = vadd.f32 0.0, %v587
      %v589 = vpop.f32.mrf.mxu0
      %590 = vdwg.mxu0
      %v607 = vunpack.c.l.b16 %v461
      %v608 = vunpack.c.l.b16 %v462
      %v609 = vunpack.c.l.b16 %v463
      %v610 = vunpack.c.l.b16 %v464
      %v611 = vunpack.c.l.b16 %v465
      %v612 = vunpack.c.l.b16 %v466
      %v613 = vunpack.c.l.b16 %v467
      %v614 = vunpack.c.l.b16 %v468
      %v615 = vunpack.c.l.b16 %v469
      %v616 = vunpack.c.l.b16 %v470
      %v617 = vunpack.c.l.b16 %v471
      %v618 = vunpack.c.l.b16 %v472
      %v619 = vunpack.c.l.b16 %v473
      %v620 = vunpack.c.l.b16 %v474
      %v621 = vunpack.c.l.b16 %v475
      %v622 = vunpack.c.l.b16 %v476
      %v623 = vpack.c.b16 %v608, %v607
      %v624 = vpack.c.b16 %v610, %v609
      %v625 = vpack.c.b16 %v612, %v611
      %v626 = vpack.c.b16 %v614, %v613
      %v627 = vpack.c.b16 %v616, %v615
      %v628 = vpack.c.b16 %v618, %v617
      %v629 = vpack.c.b16 %v620, %v619
      %v630 = vpack.c.b16 %v622, %v621
      %639 = vmatprep.subr.bf16.mxu0 0
      %640 = vmatpush1.bf16.msra.mxu0 %v630
      %641 = vmatprep.subr.bf16.mxu0 0
      %642 = vmatpush1.bf16.msra.mxu0 %v629
      %643 = vmatprep.subr.bf16.mxu0 0
      %644 = vmatpush1.bf16.msra.mxu0 %v628
      %645 = vmatprep.subr.bf16.mxu0 0
      %646 = vmatpush1.bf16.msra.mxu0 %v627
      %647 = vmatprep.subr.bf16.mxu0 0
      %648 = vmatpush1.bf16.msra.mxu0 %v626
      %649 = vmatprep.subr.bf16.mxu0 0
      %650 = vmatpush1.bf16.msra.mxu0 %v625
      %651 = vmatprep.subr.bf16.mxu0 0
      %652 = vmatpush1.bf16.msra.mxu0 %v624
      %653 = vmatprep.subr.bf16.mxu0 0
      %654 = vmatpush1.bf16.msra.mxu0 %v623
      %655 = vmatprep.subr.bf16.mxu0 0
      %656 = vmatpush2.bf16.msra.mxu0 0
      %657 = vmatprep.subr.bf16.mxu0 0
      %658 = vmatpush2.bf16.msra.mxu0 0
      %659 = vmatprep.subr.bf16.mxu0 0
      %660 = vmatpush2.bf16.msra.mxu0 0
      %661 = vmatprep.subr.bf16.mxu0 0
      %662 = vmatpush2.bf16.msra.mxu0 0
      %663 = vmatprep.subr.bf16.mxu0 0
      %664 = vmatpush2.bf16.msra.mxu0 0
      %665 = vmatprep.subr.bf16.mxu0 0
      %666 = vmatpush2.bf16.msra.mxu0 0
      %667 = vmatprep.subr.bf16.mxu0 0
      %668 = vmatpush2.bf16.msra.mxu0 0
      %669 = vmatprep.subr.bf16.mxu0 0
      %670 = vmatpush2.bf16.msra.mxu0 0
      %671 = vmatprep.mubr.bf16.mxu0 0
      %672 = vmatmul.mubr.bf16.gmra.mxu0 %v455
      %v673 = vpop.f32.mrf.mxu0
      %v674 = vadd.f32 %v577, %v673
      %v675 = vpop.f32.mrf.mxu0
      %v676 = vpop.f32.mrf.mxu0
      %v677 = vadd.f32 %v580, %v676
      %v678 = vpop.f32.mrf.mxu0
      %679 = vmatprep.mubr.bf16.mxu0 0
      %680 = vmatmul.mubr.bf16.gmra.mxu0 %v456
      %v681 = vpop.f32.mrf.mxu0
      %v682 = vadd.f32 %v585, %v681
      %v683 = vpop.f32.mrf.mxu0
      %v684 = vpop.f32.mrf.mxu0
      %v685 = vadd.f32 %v588, %v684
      %v686 = vpop.f32.mrf.mxu0
      %687 = vdwg.mxu0
      %s688 = scalar_lea.vmem %s3, 128
      %v689 = vld [vmem:[%s688] sm:$0xf]
      %v690 = vld [vmem:[%s688 + $0x4] sm:$0xf]
      %v691 = vld [vmem:[%s688 + $0x8] sm:$0xf]
      %v692 = vld [vmem:[%s688 + $0xc] sm:$0xf]
      %v693 = vld [vmem:[%s688 + $0x10] sm:$0xf]
      %v694 = vld [vmem:[%s688 + $0x14] sm:$0xf]
      %v695 = vld [vmem:[%s688 + $0x18] sm:$0xf]
      %v696 = vld [vmem:[%s688 + $0x1c] sm:$0xf]
      %v697 = vld [vmem:[%s688 + $0x20] sm:$0xf]
      %v698 = vld [vmem:[%s688 + $0x24] sm:$0xf]
      %v699 = vld [vmem:[%s688 + $0x28] sm:$0xf]
      %v700 = vld [vmem:[%s688 + $0x2c] sm:$0xf]
      %v701 = vld [vmem:[%s688 + $0x30] sm:$0xf]
      %v702 = vld [vmem:[%s688 + $0x34] sm:$0xf]
      %v703 = vld [vmem:[%s688 + $0x38] sm:$0xf]
      %v704 = vld [vmem:[%s688 + $0x3c] sm:$0xf]
      %v721 = vunpack.c.l.b16 %v689
      %v722 = vunpack.c.l.b16 %v690
      %v723 = vunpack.c.l.b16 %v691
      %v724 = vunpack.c.l.b16 %v692
      %v725 = vunpack.c.l.b16 %v693
      %v726 = vunpack.c.l.b16 %v694
      %v727 = vunpack.c.l.b16 %v695
      %v728 = vunpack.c.l.b16 %v696
      %v729 = vunpack.c.l.b16 %v697
      %v730 = vunpack.c.l.b16 %v698
      %v731 = vunpack.c.l.b16 %v699
      %v732 = vunpack.c.l.b16 %v700
      %v733 = vunpack.c.l.b16 %v701
      %v734 = vunpack.c.l.b16 %v702
      %v735 = vunpack.c.l.b16 %v703
      %v736 = vunpack.c.l.b16 %v704
      %v737 = vpack.c.b16 %v722, %v721
      %v738 = vpack.c.b16 %v724, %v723
      %v739 = vpack.c.b16 %v726, %v725
      %v740 = vpack.c.b16 %v728, %v727
      %v741 = vpack.c.b16 %v730, %v729
      %v742 = vpack.c.b16 %v732, %v731
      %v743 = vpack.c.b16 %v734, %v733
      %v744 = vpack.c.b16 %v736, %v735
      %753 = vmatprep.subr.bf16.mxu0 0
      %754 = vmatpush1.bf16.msra.mxu0 %v744
      %755 = vmatprep.subr.bf16.mxu0 0
      %756 = vmatpush1.bf16.msra.mxu0 %v743
      %757 = vmatprep.subr.bf16.mxu0 0
      %758 = vmatpush1.bf16.msra.mxu0 %v742
      %759 = vmatprep.subr.bf16.mxu0 0
      %760 = vmatpush1.bf16.msra.mxu0 %v741
      %761 = vmatprep.subr.bf16.mxu0 0
      %762 = vmatpush1.bf16.msra.mxu0 %v740
      %763 = vmatprep.subr.bf16.mxu0 0
      %764 = vmatpush1.bf16.msra.mxu0 %v739
      %765 = vmatprep.subr.bf16.mxu0 0
      %766 = vmatpush1.bf16.msra.mxu0 %v738
      %767 = vmatprep.subr.bf16.mxu0 0
      %768 = vmatpush1.bf16.msra.mxu0 %v737
      %769 = vmatprep.subr.bf16.mxu0 0
      %770 = vmatpush2.bf16.msra.mxu0 0
      %771 = vmatprep.subr.bf16.mxu0 0
      %772 = vmatpush2.bf16.msra.mxu0 0
      %773 = vmatprep.subr.bf16.mxu0 0
      %774 = vmatpush2.bf16.msra.mxu0 0
      %775 = vmatprep.subr.bf16.mxu0 0
      %776 = vmatpush2.bf16.msra.mxu0 0
      %777 = vmatprep.subr.bf16.mxu0 0
      %778 = vmatpush2.bf16.msra.mxu0 0
      %779 = vmatprep.subr.bf16.mxu0 0
      %780 = vmatpush2.bf16.msra.mxu0 0
      %781 = vmatprep.subr.bf16.mxu0 0
      %782 = vmatpush2.bf16.msra.mxu0 0
      %783 = vmatprep.subr.bf16.mxu0 0
      %784 = vmatpush2.bf16.msra.mxu0 0
      %785 = vmatprep.mubr.bf16.mxu0 0
      %786 = vmatmul.mubr.bf16.gmra.mxu0 %v459
      %v787 = vpop.f32.mrf.mxu0
      %v788 = vadd.f32 0.0, %v787
      %v789 = vpop.f32.mrf.mxu0
      %v790 = vpop.f32.mrf.mxu0
      %v791 = vadd.f32 0.0, %v790
      %v792 = vpop.f32.mrf.mxu0
      %793 = vmatprep.mubr.bf16.mxu0 0
      %794 = vmatmul.mubr.bf16.gmra.mxu0 %v460
      %v795 = vpop.f32.mrf.mxu0
      %v796 = vadd.f32 0.0, %v795
      %v797 = vpop.f32.mrf.mxu0
      %v798 = vpop.f32.mrf.mxu0
      %v799 = vadd.f32 0.0, %v798
      %v800 = vpop.f32.mrf.mxu0
      %801 = vdwg.mxu0
      %v802 = vadd.f32 %v674, %v788
      %v803 = vadd.f32 %v677, %v791
      %v804 = vadd.f32 %v682, %v796
      %v805 = vadd.f32 %v685, %v799
      %806 = vset.pattern.permute.xlu0 1
      %807 = vperm.xlu0 %806, %v228
      %v808 = vpop.permute.xlu0 %807
      %810 = vset.pattern.permute.xlu0 1
      %811 = vperm.xlu0 %810, %v229
      %v812 = vpop.permute.xlu0 %811
      %814 = vset.pattern.permute.xlu0 1
      %815 = vperm.xlu0 %814, %v230
      %v816 = vpop.permute.xlu0 %815
      %818 = vset.pattern.permute.xlu0 1
      %819 = vperm.xlu0 %818, %v231
      %v820 = vpop.permute.xlu0 %819
      %v822 = vmul.f32 %v802, %v808
      %v823 = vmul.f32 %v803, %v812
      %v824 = vmul.f32 %v804, %v816
      %v825 = vmul.f32 %v805, %v820
      %826 = vset.pattern.permute.xlu0 2
      %827 = vperm.xlu0 %826, %v228
      %v828 = vpop.permute.xlu0 %827
      %830 = vset.pattern.permute.xlu0 2
      %831 = vperm.xlu0 %830, %v229
      %v832 = vpop.permute.xlu0 %831
      %834 = vset.pattern.permute.xlu0 2
      %835 = vperm.xlu0 %834, %v230
      %v836 = vpop.permute.xlu0 %835
      %838 = vset.pattern.permute.xlu0 2
      %839 = vperm.xlu0 %838, %v231
      %v840 = vpop.permute.xlu0 %839
      %v842 = vadd.f32 %v822, %v828
      %v843 = vadd.f32 %v823, %v832
      %v844 = vadd.f32 %v824, %v836
      %v845 = vadd.f32 %v825, %v840
      %v846 = vmax.f32 %v842, 0.0
      %v847 = vmax.f32 %v843, 0.0
      %v848 = vmax.f32 %v844, 0.0
      %v849 = vmax.f32 %v845, 0.0
      %v850 = vpack.c.bf16 %v847, %v846
      %v851 = vpack.c.bf16 %v849, %v848
      %v852 = vld [vmem:[%s4] sm:$0xf]
      %v853 = vld [vmem:[%s4 + $0x4] sm:$0xf]
      %v854 = vld [vmem:[%s4 + $0x8] sm:$0xf]
      %v855 = vld [vmem:[%s4 + $0xc] sm:$0xf]
      %v856 = vld [vmem:[%s4 + $0x10] sm:$0xf]
      %v857 = vld [vmem:[%s4 + $0x14] sm:$0xf]
      %v858 = vld [vmem:[%s4 + $0x18] sm:$0xf]
      %v859 = vld [vmem:[%s4 + $0x1c] sm:$0xf]
      %v860 = vld [vmem:[%s4 + $0x20] sm:$0xf]
      %v861 = vld [vmem:[%s4 + $0x24] sm:$0xf]
      %v862 = vld [vmem:[%s4 + $0x28] sm:$0xf]
      %v863 = vld [vmem:[%s4 + $0x2c] sm:$0xf]
      %v876 = vunpack.c.l.b16 %v852
      %v877 = vunpack.c.l.b16 %v853
      %v878 = vunpack.c.l.b16 %v854
      %v879 = vunpack.c.l.b16 %v855
      %v880 = vunpack.c.l.b16 %v856
      %v881 = vunpack.c.l.b16 %v857
      %v882 = vunpack.c.l.b16 %v858
      %v883 = vunpack.c.l.b16 %v859
      %v884 = vunpack.c.l.b16 %v860
      %v885 = vunpack.c.l.b16 %v861
      %v886 = vunpack.c.l.b16 %v862
      %v887 = vunpack.c.l.b16 %v863
      %v888 = vpack.c.b16 %v877, %v876
      %v889 = vpack.c.b16 %v879, %v878
      %v890 = vpack.c.b16 %v881, %v880
      %v891 = vpack.c.b16 %v883, %v882
      %v892 = vpack.c.b16 %v885, %v884
      %v893 = vpack.c.b16 %v887, %v886
      %vm894 = vcmask 392192
      %v896 = vsel %vm894, %v888, 0
      %v899 = vsel %vm894, %v889, 0
      %v902 = vsel %vm894, %v890, 0
      %v905 = vsel %vm894, %v891, 0
      %v908 = vsel %vm894, %v892, 0
      %v911 = vsel %vm894, %v893, 0
      %913 = vmatprep.subr.bf16.mxu0 0
      %914 = vmatpush1.bf16.msra.mxu0 0
      %915 = vmatprep.subr.bf16.mxu0 0
      %916 = vmatpush1.bf16.msra.mxu0 0
      %917 = vmatprep.subr.bf16.mxu0 0
      %918 = vmatpush1.bf16.msra.mxu0 0
      %919 = vmatprep.subr.bf16.mxu0 0
      %920 = vmatpush1.bf16.msra.mxu0 0
      %921 = vmatprep.subr.bf16.mxu0 0
      %922 = vmatpush1.bf16.msra.mxu0 0
      %923 = vmatprep.subr.bf16.mxu0 0
      %924 = vmatpush1.bf16.msra.mxu0 %v240
      %925 = vmatprep.subr.bf16.mxu0 0
      %926 = vmatpush1.bf16.msra.mxu0 %v851
      %927 = vmatprep.subr.bf16.mxu0 0
      %928 = vmatpush1.bf16.msra.mxu0 %v850
      %929 = vmatprep.subr.bf16.mxu0 0
      %930 = vmatpush2.bf16.msra.mxu0 0
      %931 = vmatprep.subr.bf16.mxu0 0
      %932 = vmatpush2.bf16.msra.mxu0 0
      %933 = vmatprep.subr.bf16.mxu0 0
      %934 = vmatpush2.bf16.msra.mxu0 0
      %935 = vmatprep.subr.bf16.mxu0 0
      %936 = vmatpush2.bf16.msra.mxu0 0
      %937 = vmatprep.subr.bf16.mxu0 0
      %938 = vmatpush2.bf16.msra.mxu0 0
      %939 = vmatprep.subr.bf16.mxu0 0
      %940 = vmatpush2.bf16.msra.mxu0 0
      %941 = vmatprep.subr.bf16.mxu0 0
      %942 = vmatpush2.bf16.msra.mxu0 0
      %943 = vmatprep.subr.bf16.mxu0 0
      %944 = vmatpush2.bf16.msra.mxu0 0
      %945 = vmatprep.mubr.bf16.mxu0 0
      %946 = vmatmul.mubr.bf16.gmra.mxu0 %v896
      %v947 = vpop.f32.mrf.mxu0
      %v948 = vadd.f32 0.0, %v947
      %v949 = vpop.f32.mrf.mxu0
      %v950 = vpop.f32.mrf.mxu0
      %v951 = vadd.f32 0.0, %v950
      %v952 = vpop.f32.mrf.mxu0
      %953 = vmatprep.mubr.bf16.mxu0 0
      %954 = vmatmul.mubr.bf16.gmra.mxu0 %v899
      %v955 = vpop.f32.mrf.mxu0
      %v956 = vadd.f32 0.0, %v955
      %v957 = vpop.f32.mrf.mxu0
      %v958 = vpop.f32.mrf.mxu0
      %v959 = vadd.f32 0.0, %v958
      %v960 = vpop.f32.mrf.mxu0
      %961 = vmatprep.mubr.bf16.mxu0 0
      %962 = vmatmul.mubr.bf16.gmra.mxu0 %v902
      %v963 = vpop.f32.mrf.mxu0
      %v964 = vadd.f32 0.0, %v963
      %v965 = vpop.f32.mrf.mxu0
      %v966 = vpop.f32.mrf.mxu0
      %v967 = vadd.f32 0.0, %v966
      %v968 = vpop.f32.mrf.mxu0
      %969 = vmatprep.mubr.bf16.mxu0 0
      %970 = vmatmul.mubr.bf16.gmra.mxu0 %v905
      %v971 = vpop.f32.mrf.mxu0
      %v972 = vadd.f32 0.0, %v971
      %v973 = vpop.f32.mrf.mxu0
      %v974 = vpop.f32.mrf.mxu0
      %v975 = vadd.f32 0.0, %v974
      %v976 = vpop.f32.mrf.mxu0
      %977 = vmatprep.mubr.bf16.mxu0 0
      %978 = vmatmul.mubr.bf16.gmra.mxu0 %v908
      %v979 = vpop.f32.mrf.mxu0
      %v980 = vadd.f32 0.0, %v979
      %v981 = vpop.f32.mrf.mxu0
      %v982 = vpop.f32.mrf.mxu0
      %v983 = vadd.f32 0.0, %v982
      %v984 = vpop.f32.mrf.mxu0
      %985 = vmatprep.mubr.bf16.mxu0 0
      %986 = vmatmul.mubr.bf16.gmra.mxu0 %v911
      %v987 = vpop.f32.mrf.mxu0
      %v988 = vadd.f32 0.0, %v987
      %v989 = vpop.f32.mrf.mxu0
      %v990 = vpop.f32.mrf.mxu0
      %v991 = vadd.f32 0.0, %v990
      %v992 = vpop.f32.mrf.mxu0
      %993 = vdwg.mxu0
      %v994 = vlaneseq
      %v995 = vand.u32 %v994, 127
      %996 = vrot.lane.b32.xlu0 %v948, 16
      %v997 = vpop.permute.xlu0 %996
      %998 = vrot.lane.b32.xlu0 %v951, 16
      %v999 = vpop.permute.xlu0 %998
      %1000 = vrot.lane.b32.xlu0 %v956, 16
      %v1001 = vpop.permute.xlu0 %1000
      %1002 = vrot.lane.b32.xlu0 %v959, 16
      %v1003 = vpop.permute.xlu0 %1002
      %vm1004 = vcmp.ge.s32.totalorder %v995, 16
      %v1005 = vsel %vm1004, %v997, 0.0
      %v1006 = vsel %vm1004, %v999, 0.0
      %v1007 = vsel %vm1004, %v1001, 0.0
      %v1008 = vsel %vm1004, %v1003, 0.0
      %1009 = vrot.lane.b32.xlu0 %v980, 112
      %v1010 = vpop.permute.xlu0 %1009
      %1011 = vrot.lane.b32.xlu0 %v983, 112
      %v1012 = vpop.permute.xlu0 %1011
      %1013 = vrot.lane.b32.xlu0 %v988, 112
      %v1014 = vpop.permute.xlu0 %1013
      %1015 = vrot.lane.b32.xlu0 %v991, 112
      %v1016 = vpop.permute.xlu0 %1015
      %vm1017 = vcmp.lt.s32.totalorder %v995, 112
      %v1018 = vsel %vm1017, %v1010, 0.0
      %v1019 = vsel %vm1017, %v1012, 0.0
      %v1020 = vsel %vm1017, %v1014, 0.0
      %v1021 = vsel %vm1017, %v1016, 0.0
      %v1022 = vadd.f32 %v1005, %v964
      %v1023 = vadd.f32 %v1006, %v967
      %v1024 = vadd.f32 %v1007, %v972
      %v1025 = vadd.f32 %v1008, %v975
      %v1026 = vadd.f32 %v1022, %v1018
      %v1027 = vadd.f32 %v1023, %v1019
      %v1028 = vadd.f32 %v1024, %v1020
      %v1029 = vadd.f32 %v1025, %v1021
      %1030 = vset.pattern.permute.xlu0 3
      %1031 = vperm.xlu0 %1030, %v228
      %v1032 = vpop.permute.xlu0 %1031
      %1034 = vset.pattern.permute.xlu0 3
      %1035 = vperm.xlu0 %1034, %v229
      %v1036 = vpop.permute.xlu0 %1035
      %1038 = vset.pattern.permute.xlu0 3
      %1039 = vperm.xlu0 %1038, %v230
      %v1040 = vpop.permute.xlu0 %1039
      %1042 = vset.pattern.permute.xlu0 3
      %1043 = vperm.xlu0 %1042, %v231
      %v1044 = vpop.permute.xlu0 %1043
      %v1046 = vadd.f32 %v1026, %v1032
      %v1047 = vadd.f32 %v1027, %v1036
      %v1048 = vadd.f32 %v1028, %v1040
      %v1049 = vadd.f32 %v1029, %v1044
      %1050 = vst [vmem:[%s224] sm:$0xff] %v1046
      %1051 = vst [vmem:[%s224 + $0x8] sm:$0xff] %v1047
      %1052 = vst [vmem:[%s224 + $0x10] sm:$0xff] %v1048
      %1053 = vst [vmem:[%s224 + $0x18] sm:$0xff] %v1049
      %p1054 = scmp.lt.s32.totalorder %s16, 1
      %s1055 = scalar_select %p1054, %s16, 1
      %s1056 = smul.addr %s1055, 4
      %s1057 = smul.addr %s1056, 8
      %s1058 = scalar_lea.vmem %s5, %s1057
      // Predicated region
      $region41: #{gcn_block_forward.1} parent=39 // pred_check
        %p1059 = pneg %p144
      $region42: #{gcn_block_forward.1} parent=39 // pred_check_branch
        %1061 = sbr.rel (%p1059) target = $region44
      $region43: #{gcn_block_forward.1} parent=39 // pred_region
        _
      $region44: #{gcn_block_forward.1} parent=39 // pred_fallthru
        _
    $region40: #{gcn_block_forward.1} parent=5 // pred_fallthru
      _
    %p1062 = scmp.le.s32.totalorder 2, %s11
    // Predicated region
    $region45: #{gcn_block_forward.1} parent=5 // pred_check
      %p1063 = pneg %p1062
    $region46: #{gcn_block_forward.1} parent=5 // pred_check_branch
      %1065 = sbr.rel (%p1063) target = $region48
    $region47: #{gcn_block_forward.1} parent=5 // pred_region
      %s1066 = ssub.s32 %s11, 2
      // Predicated region
      $region49: #{gcn_block_forward.1} parent=47 // pred_check
        %p1067 = pneg %p150
      $region50: #{gcn_block_forward.1} parent=47 // pred_check_branch
        %1069 = sbr.rel (%p1067) target = $region52
      $region51: #{gcn_block_forward.1} parent=47 // pred_region
        %p1070 = scmp.lt.s32.totalorder %s17, 1
        %s1071 = scalar_select %p1070, %s17, 1
        %s1072 = smul.addr %s1071, 4
        %s1073 = smul.addr %s1072, 8
        %s1074 = scalar_lea.vmem %s5, %s1073
      $region52: #{gcn_block_forward.1} parent=47 // pred_fallthru
        _
    $region48: #{gcn_block_forward.1} parent=5 // pred_fallthru
      _
  $region6: #{gcn_block_forward.1} parent=0 // loop_footer
    %s15 = sadd.s32 1, %s11
  $region7: #{gcn_block_forward.1} parent=0 // loop_footer_branch
    %10 = sbr.rel target = $region3
  $region8: #{gcn_block_forward.1} parent=0 // loop_exit
    _

</llo_original>
